<compile_context>
chip_gen: v7x
topology: tpu7x:2x2x1
jax: 0.10.0
libtpu: 0.0.40
codegen_flags: <defaults>
</compile_context>

<pallas_src>
import functools

import jax
import jax.numpy as jnp
from jax.experimental import pallas as pl
from jax.experimental.pallas import tpu as pltpu

LANES = 128


@functools.lru_cache(maxsize=1)
def _tpu_config():
    """(block_bytes, vmem_limit_bytes) per TPU generation.

    The elementwise pass double-buffers input and output (4x block), which
    must stay under the scoped-VMEM limit (v5e default 16 MiB, v6e/v7x 32 MiB;
    v7x physical VMEM is only 64 MiB).
    """
    kind = ""
    try:
        kind = jax.devices()[0].device_kind.lower()
    except Exception:
        pass
    if "v7" in kind:
        # 4 x 6 MiB = 24 MiB of buffers; set the limit explicitly with headroom.
        return 6 * 1024 * 1024, 48 * 1024 * 1024
    if "v6" in kind:
        return 4 * 1024 * 1024, None          # 16 MiB buffers < 32 MiB default
    # v5e (and older / unknown): 2 MiB blocks (8 MiB buffers < 16 MiB default);
    # at ~0.8 TB/s the per-grid-step overhead is already negligible here.
    return 2 * 1024 * 1024, None


# ----------------------------- Pallas kernels ------------------------------

def _relu_kernel(x_ref, o_ref):
    """y = relu(x) on one (tile_rows, width) VMEM tile (no clip operand)."""
    x = x_ref[...]
    o_ref[...] = jnp.maximum(x, jnp.zeros((), x.dtype))


def _relu_clip_kernel(clip_ref, x_ref, o_ref):
    """y = min(relu(x), clip). clip_ref: (1,) f32 scalar in SMEM."""
    x = x_ref[...]
    zero = jnp.zeros((), x.dtype)
    c = clip_ref[0].astype(x.dtype)
    o_ref[...] = jnp.minimum(jnp.maximum(x, zero), c)


def _max_eval_kernel(clip_ref, x_ref, o_ref):
    """eval 'max' mode: x[x > clip] = 0 ; y = relu(x).

    Compare in f32 to faithfully match the torch float32-buffer comparison
    (a native-dtype compare would be cheaper on v5e but can flip boundary
    values for bf16/int inputs).
    """
    x = x_ref[...]
    zero = jnp.zeros((), x.dtype)
    c = clip_ref[0]
    y = jnp.where(x.astype(jnp.float32) > c, zero, x)
    o_ref[...] = jnp.maximum(y, zero)


def _dtype_min_scalar(dtype):
    dtype = jnp.dtype(dtype)
    if jnp.issubdtype(dtype, jnp.floating):
        return jnp.asarray(jnp.finfo(dtype).min, dtype)
    return jnp.asarray(jnp.iinfo(dtype).min, dtype)


def _fold(v, acc_rows):
    """Fold a (tile_rows, width) tile into (acc_rows, width) with VPU maxes."""
    tr, w = v.shape
    if tr == acc_rows:
        return v
    return jnp.max(v.reshape(tr // acc_rows, acc_rows, w), axis=0)


def _max_kernel(x_ref, o_ref, acc_ref, *, acc_rows, blocks_per_chunk,
                last_valid_rows):
    """Per-chunk running max with a small (acc_rows, width) VMEM accumulator.

    Each step folds its tile into the accumulator with pure-VPU maxes; the
    single cross-lane/sublane reduction happens on the chunk's last step only.
    `last_valid_rows` (static) enables masking of the tail rows of the
    globally-last, partial block — gated by pl.when so full blocks pay nothing.
    """
    b = pl.program_id(1)
    x = x_ref[...]
    mn = _dtype_min_scalar(x.dtype)

    @pl.when(b == 0)
    def _():
        acc_ref[...] = jnp.broadcast_to(mn, acc_ref.shape)

    if last_valid_rows is None:
        acc_ref[...] = jnp.maximum(acc_ref[...], _fold(x, acc_rows))
    else:
        gi = pl.program_id(0) * blocks_per_chunk + b
        is_last = gi == pl.num_programs(0) * blocks_per_chunk - 1

        @pl.when(jnp.logical_not(is_last))
        def _():
            acc_ref[...] = jnp.maximum(acc_ref[...], _fold(x, acc_rows))

        @pl.when(is_last)
        def _():
            row_ids = jax.lax.broadcasted_iota(jnp.int32, x.shape, 0)
            xm = jnp.where(row_ids >= last_valid_rows, mn, x)
            acc_ref[...] = jnp.maximum(acc_ref[...], _fold(xm, acc_rows))

    @pl.when(b == blocks_per_chunk - 1)
    def _():
        o_ref[...] = jnp.broadcast_to(jnp.max(acc_ref[...]), o_ref.shape)


# ------------------------------ layout helpers ------------------------------

def _plan(n, itemsize, block_bytes):
    """Lane-dense (rows, width) slab plan; pads only if n % 128 != 0."""
    sub = max(8, 32 // itemsize)            # 8 f32 / 16 bf16 / 32 int8 sublanes
    width = None
    for w in (4096, 2048, 1024, 512, 256, 128):
        if n % w == 0:
            width = w
            break
    needs_pad = width is None
    if needs_pad:
        width = LANES
        rows = -(-n // LANES)
    else:
        rows = n // width
    cap = max(sub, (block_bytes // (width * itemsize)) // sub * sub)
    tile_rows = rows if rows <= cap else cap   # partial last block handled in-kernel
    return width, rows, tile_rows, needs_pad, sub


def _to_slab(x, pad_value, block_bytes):
    flat = x.reshape(-1)
    n = flat.shape[0]
    width, rows, tile_rows, needs_pad, _ = _plan(n, x.dtype.itemsize, block_bytes)
    if needs_pad:
        # Rare path (numel not a multiple of 128): one extra copy.
        flat = jnp.concatenate(
            [flat, jnp.full((rows * width - n,), pad_value, dtype=flat.dtype)]
        )
    return flat.reshape(rows, width), n, tile_rows


def _from_slab(y2d, n, shape):
    flat = y2d.reshape(-1)
    if flat.shape[0] != n:
        flat = flat[:n]
    return flat.reshape(shape)


# ------------------------------ pallas_call glue -----------------------------

def _elementwise_call(x2d, tile_rows, clip, mode, training, vmem_limit):
    rows, width = x2d.shape
    grid = (pl.cdiv(rows, tile_rows),)       # partial last block: OOB writes dropped
    blk = pl.BlockSpec((tile_rows, width), lambda i: (i, 0))
    params = pltpu.CompilerParams(
        dimension_semantics=("parallel",), vmem_limit_bytes=vmem_limit)

    # 'max' training: clip_value = max(old>=0, x.max()) >= relu(x) elementwise,
    # so the clip is a no-op -> plain ReLU, no SMEM operand, no dependency on
    # the reduction result.
    plain_relu = mode is None or (mode == "max" and training)
    if plain_relu:
        # TODO(synk): if the caller can donate x, add input_output_aliases={0: 0}
        # (and {1: 0} for the clip kernel) so the output reuses x's HBM buffer;
        # not done here because x is reused by the test harness.
        return pl.pallas_call(
            _relu_kernel,
            out_shape=jax.ShapeDtypeStruct(x2d.shape, x2d.dtype),
            grid=grid,
            in_specs=[blk],
            out_specs=blk,
            compiler_params=params,
        )(x2d)

    kernel = _max_eval_kernel if (mode == "max" and not training) else _relu_clip_kernel
    return pl.pallas_call(
        kernel,
        out_shape=jax.ShapeDtypeStruct(x2d.shape, x2d.dtype),
        grid=grid,
        in_specs=[
            pl.BlockSpec(memory_space=pltpu.MemorySpace.SMEM),
            blk,
        ],
        out_specs=blk,
        compiler_params=params,
    )(clip, x2d)


def _global_max_call(x2d, tile_rows, vmem_limit):
    rows, width = x2d.shape
    dtype = x2d.dtype
    sub = max(8, 32 // dtype.itemsize)
    n_blocks = pl.cdiv(rows, tile_rows)
    tail = rows - (n_blocks - 1) * tile_rows
    last_valid_rows = None if tail == tile_rows else tail
    # Two-chunk outer 'parallel' axis lets both v7x TensorCores stream the
    # tensor; on 1-TC chips it is just a serial outer loop (negligible cost).
    n_chunks = 2 if (n_blocks >= 2 and n_blocks % 2 == 0) else 1
    bpc = n_blocks // n_chunks
    acc_rows = sub if tile_rows % sub == 0 else tile_rows

    kernel = functools.partial(
        _max_kernel, acc_rows=acc_rows, blocks_per_chunk=bpc,
        last_valid_rows=last_valid_rows)

    partials = pl.pallas_call(
        kernel,
        out_shape=jax.ShapeDtypeStruct((n_chunks * sub, LANES), dtype),
        grid=(n_chunks, bpc),
        in_specs=[pl.BlockSpec((tile_rows, width), lambda c, b: (c * bpc + b, 0))],
        out_specs=pl.BlockSpec((sub, LANES), lambda c, b: (c, 0)),
        scratch_shapes=[pltpu.VMEM((acc_rows, width), dtype)],
        compiler_params=pltpu.CompilerParams(
            dimension_semantics=("parallel", "arbitrary"),
            vmem_limit_bytes=vmem_limit,
        ),
    )(x2d)
    return jnp.max(partials).reshape(1)


# ------------------------------ module wrapper ------------------------------

class ReLUx:
    """JAX/Pallas port of the PyTorch ReLUx module."""

    def __init__(self, relux_operation=None):
        self.relux_operation = relux_operation
        # register_buffer('clip_value', torch.tensor([0.0]))
        # Note: 'relu6' in eval mode before any training forward clips at 0.0,
        # exactly like the PyTorch module.
        self.clip_value = jnp.zeros((1,), jnp.float32)
        self.training = True

    def train(self):
        self.training = True
        return self

    def eval(self):
        self.training = False
        return self

    def __call__(self, x):
        mode = self.relux_operation
        shape, dtype = x.shape, x.dtype
        block_bytes, vmem_limit = _tpu_config()

        if mode is None:
            x2d, n, tr = _to_slab(x, jnp.zeros((), dtype), block_bytes)
            y2d = _elementwise_call(x2d, tr, None, None, self.training, vmem_limit)
            return _from_slab(y2d, n, shape)

        if self.training:
            if mode == "max":
                # One slab shared by the max pass and the elementwise pass;
                # pad (rare path only) uses dtype-min so it never affects the max.
                x2d, n, tr = _to_slab(x, _dtype_min_scalar(dtype), block_bytes)
                xmax = _global_max_call(x2d, tr, vmem_limit)
                self.clip_value = jnp.maximum(
                    self.clip_value, xmax.astype(jnp.float32))
                # clip_value >= relu(x) (buffer starts at 0 and only grows), so
                # clip() is a no-op: plain ReLU, independent of the reduction.
                y2d = _elementwise_call(x2d, tr, None, "max", True, vmem_limit)
                return _from_slab(y2d, n, shape)
            if mode == "relu6":
                self.clip_value = jnp.full((1,), 6.0, jnp.float32)
            x2d, n, tr = _to_slab(x, jnp.zeros((), dtype), block_bytes)
            y2d = _elementwise_call(x2d, tr, self.clip_value, mode, True, vmem_limit)
            return _from_slab(y2d, n, shape)

        # eval
        x2d, n, tr = _to_slab(x, jnp.zeros((), dtype), block_bytes)
        y2d = _elementwise_call(x2d, tr, self.clip_value, mode, False, vmem_limit)
        return _from_slab(y2d, n, shape)


# ---------------------------------- main ------------------------------------

if __name__ == "__main__":
    key = jax.random.PRNGKey(0)
    k0, k1, k2, k3 = jax.random.split(key, 4)

    # NCHW, small shapes; scaled so some values exceed 6.0
    x = jax.random.normal(k0, (2, 4, 16, 16), jnp.float32) * 10.0

    # mode None: plain ReLU
    m0 = ReLUx(None)
    y0 = jax.block_until_ready(m0(x))
    assert jnp.allclose(y0, jnp.maximum(x, 0.0)), "ReLU mismatch"

    # mode relu6, training: clip_value -> 6.0
    m6 = ReLUx("relu6").train()
    y6 = jax.block_until_ready(m6(x))
    assert jnp.allclose(y6, jnp.clip(jnp.maximum(x, 0.0), max=6.0)), "ReLU6 mismatch"
    assert float(m6.clip_value[0]) == 6.0

    # mode max, training: clip_value -> max(old, x.max()); y == clipped relu
    mm = ReLUx("max").train()
    ym = jax.block_until_ready(mm(x))
    expected_clip = jnp.maximum(jnp.zeros(()), x.max())
    assert jnp.allclose(mm.clip_value[0], expected_clip), "clip buffer mismatch"
    assert jnp.allclose(
        ym, jnp.minimum(jnp.maximum(x, 0.0), expected_clip)
    ), "ReLUMax(train) mismatch"

    # mode max, eval: x[x > clip] = 0 ; relu(x)
    mm.eval()
    c = mm.clip_value[0]
    ye = jax.block_until_ready(mm(x))
    ref_e = jnp.maximum(jnp.where(x > c, 0.0, x), 0.0)
    assert jnp.allclose(ye, ref_e), "ReLUMax(eval) mismatch"

    # Non-multiple-of-128 numel (rare pad path) through the module.
    xo = jax.random.normal(k1, (2, 3, 5, 7), jnp.float32) * 10.0
    mo = ReLUx("max").train()
    yo = jax.block_until_ready(mo(xo))
    assert jnp.allclose(mo.clip_value[0], jnp.maximum(0.0, xo.max())), \
        "pad-path clip mismatch"
    assert jnp.allclose(yo, jnp.maximum(xo, 0.0)), "pad-path ReLUMax mismatch"

    # Direct kernel checks for the partial-last-block paths (forced small tiles).
    xe = jax.random.normal(k2, (40, 128), jnp.float32)
    ye2 = jax.block_until_ready(_elementwise_call(xe, 16, None, None, True, None))
    assert jnp.allclose(ye2, jnp.maximum(xe, 0.0)), "partial-block relu mismatch"

    xg = jax.random.normal(k3, (56, 128), jnp.float32)
    mg = jax.block_until_ready(_global_max_call(xg, 16, None))
    assert jnp.allclose(mg[0], xg.max()), "chunked/masked global max mismatch"

    print("KERNEL_OK")
</pallas_src>

<mosaic_0001>
module attributes {stable_mosaic.version = 11 : i64} {
  func.func @_relu_kernel(%arg0: i32, %arg1: memref<1x2048xf32, #tpu.memory_space<vmem>>, %arg2: memref<1x2048xf32, #tpu.memory_space<vmem>>) attributes {dimension_semantics = [#tpu.dimension_semantics<parallel>], iteration_bounds = array<i64: 1>, scalar_prefetch = 0 : i64, scratch_operands = 0 : i64, tpu.core_type = #tpu.core_type<tc>, window_params = [{transform_indices = @transform_0, window_bounds = array<i64: 1, 2048>}, {transform_indices = @transform_1, window_bounds = array<i64: 1, 2048>}]} {
    %c0 = arith.constant 0 : index
    %c0_0 = arith.constant 0 : index
    %0 = vector.load %arg1[%c0, %c0_0] : memref<1x2048xf32, #tpu.memory_space<vmem>>, vector<1x2048xf32>
    %cst = arith.constant 0.000000e+00 : f32
    %1 = vector.broadcast %cst : f32 to vector<1x2048xf32>
    %2 = arith.maximumf %0, %1 : vector<1x2048xf32>
    %c0_1 = arith.constant 0 : index
    %c0_2 = arith.constant 0 : index
    %3 = vector.load %arg2[%c0_1, %c0_2] : memref<1x2048xf32, #tpu.memory_space<vmem>>, vector<1x2048xf32>
    tpu.vector_store %arg2[%c0_1, %c0_2], %2 {strides = array<i32>} : memref<1x2048xf32, #tpu.memory_space<vmem>>, vector<1x2048xf32>,
    return
  }
  func.func @transform_0(%arg0: i32) -> (i32, i32) {
    %c0_i32 = arith.constant 0 : i32
    %c0_i32_0 = arith.constant 0 : i32
    return %arg0, %c0_i32 : i32, i32
  }
  func.func @transform_1(%arg0: i32) -> (i32, i32) {
    %c0_i32 = arith.constant 0 : i32
    %c0_i32_0 = arith.constant 0 : i32
    return %arg0, %c0_i32 : i32, i32
  }
}

</mosaic_0001>

<llo_original>
// kernel: tpu_custom_call.1
$region0: #{tpu_custom_call.1}
  #allocation0 [shape = 'u32[]', space=smem, size = 0x4, offset = 0x4, fixed_abs, tag = 'smem constant byte address 0x4 - core index']
  #allocation1 [shape = 'u32[144,128]{1,0:T(1,128)}', space=vmem, size = 0x12000, scoped, tag = 'internal scratch']
  %s0 = inlined_call_operand.hbm [shape: f32[1,2048], index: 0, kind: input, shape index: {}]
  %s1 = inlined_call_operand.hbm [shape: f32[1,2048], index: 1, kind: output, shape index: {}]
  %s2 = sld [smem:[#allocation0]]
  $region18: #{tpu_custom_call.1} parent=0
    _
  %s4 = ssub.s32 1, %s2
  %s5 = scalar_select 0, %s4, %s2
  $region1: #{tpu_custom_call.1} parent=0
    #allocation2 [shape = 'u8[8192]{0}', space=vmem, size = 0x2000, scoped, tag = 'input window, operand 0, single buffered']
    #allocation3 [shape = 's32[1]{0}', space=sflag, size = 0x4, scoped, tag = 'scoped memory for tpu_custom_call.1']
    #allocation4 [shape = 's32[1]{0}', space=sflag, size = 0x4, scoped, tag = 'scoped memory for tpu_custom_call.1']
    #allocation5 [shape = 'u8[8192]{0}', space=vmem, size = 0x2000, scoped, tag = 'output window, operand 0, single buffered']
    %6 = vsyncpa [#allocation3], 0
    %7 = vsyncpa [#allocation4], 0
    // Predicated region
    $region2: #{tpu_custom_call.1} parent=1 // pred_check
      _
    $region3: #{tpu_custom_call.1} parent=1 // pred_check_branch
      %9 = sbr.rel (0) target = $region5
    $region4: #{tpu_custom_call.1} parent=1 // pred_region
      %s11 = ssub.s32 256, 256
      %12 = vsyncadd [#allocation3], %s11
      %s14 = sshll.u32 [#allocation2], 4
      %s15 = int_to_ptr.vmem [resolvable:$true] %s14
      %17 = dma.hbm_to_vmem [thread:$0]  %s0, 256, %s15, [#allocation3]
    $region5: #{tpu_custom_call.1} parent=1 // pred_fallthru
      _
    // Predicated region
    $region6: #{tpu_custom_call.1} parent=1 // pred_check
      _
    $region7: #{tpu_custom_call.1} parent=1 // pred_check_branch
      %19 = sbr.rel (0) target = $region9
    $region8: #{tpu_custom_call.1} parent=1 // pred_region
      %20 = dma.done [#allocation3], 256
    $region9: #{tpu_custom_call.1} parent=1 // pred_fallthru
      _
    %v21 = vld [vmem:[#allocation2] sm:$0xff]
    %v22 = vld [vmem:[#allocation2 + $0x8] sm:$0xff]
    %v23 = vmax.f32 %v21, 0.0
    %v24 = vmax.f32 %v22, 0.0
    %25 = vst [vmem:[#allocation5] sm:$0xff] %v23
    %26 = vst [vmem:[#allocation5 + $0x8] sm:$0xff] %v24
    // Predicated region
    $region10: #{tpu_custom_call.1} parent=1 // pred_check
      _
    $region11: #{tpu_custom_call.1} parent=1 // pred_check_branch
      %28 = sbr.rel (0) target = $region13
    $region12: #{tpu_custom_call.1} parent=1 // pred_region
      %s30 = ssub.s32 256, 256
      %31 = vsyncadd [#allocation4], %s30
      %s33 = sshll.u32 [#allocation5], 4
      %s34 = int_to_ptr.vmem [resolvable:$true] %s33
      %36 = dma.vmem_to_hbm [thread:$0]  %s34, 256, %s1, [#allocation4]
    $region13: #{tpu_custom_call.1} parent=1 // pred_fallthru
      _
    // Predicated region
    $region14: #{tpu_custom_call.1} parent=1 // pred_check
      _
    $region15: #{tpu_custom_call.1} parent=1 // pred_check_branch
      %38 = sbr.rel (0) target = $region17
    $region16: #{tpu_custom_call.1} parent=1 // pred_region
      %39 = dma.done [#allocation4], 256
    $region17: #{tpu_custom_call.1} parent=1 // pred_fallthru
      _
    %40 = vsyncpa [#allocation3], 1
    %41 = vsyncpa [#allocation4], 1

</llo_original>
